<compile_context>
chip_gen: v6e
topology: v6e:2x2x1
jax: 0.10.0
libtpu: 0.0.40
codegen_flags: <defaults>
</compile_context>

<pallas_src>
import functools

import jax
import jax.numpy as jnp
from jax.experimental import pallas as pl
from jax.experimental.pallas import tpu as pltpu


def _loss_tile_kernel(label_ref, zsr_ref, aux_ref, ood_ref, out_ref, *, batch):
    tb, c = zsr_ref.shape
    i = pl.program_id(0)

    # Labels: one resident (padded_B, 1) VMEM block; slice this tile's rows.
    row0 = pl.multiple_of(i * tb, 8)
    labels = label_ref[pl.ds(row0, tb), :]                       # (tb, 1) int32
    col = jax.lax.broadcasted_iota(jnp.int32, (tb, c), 1)        # class idx/lane
    picked_mask = col == labels                                  # (tb, c) bool

    def picked(x):
        # Exactly one nonzero per row -> summing in the native dtype is exact.
        zero = jnp.zeros((), dtype=x.dtype)
        return jnp.sum(jnp.where(picked_mask, x, zero), axis=-1,
                       keepdims=True).astype(jnp.float32)        # (tb, 1) f32

    def ce_rows(ref):
        # select / max / shift in the native dtype (packed bf16 vregs);
        # upcast only for the exp + accumulate path (numerically stable lse).
        x = ref[...]
        m = jnp.max(x, axis=-1, keepdims=True)
        shifted = (x - m).astype(jnp.float32)
        lse = (jnp.log(jnp.sum(jnp.exp(shifted), axis=-1, keepdims=True))
               + m.astype(jnp.float32))
        return lse - picked(x)                                   # (tb, 1) f32

    def zsr_rows():
        return 1.0 - picked(zsr_ref[...])                        # (tb, 1) f32

    def emit(p_zsr, p_aux, p_ood):
        # Lane-dense (8, 128) output block: sublane 0 = zsr, 1 = aux, 2 = ood.
        sub = jax.lax.broadcasted_iota(jnp.int32, (8, 128), 0)
        out_ref[0] = (jnp.where(sub == 0, p_zsr, 0.0)
                      + jnp.where(sub == 1, p_aux, 0.0)
                      + jnp.where(sub == 2, p_ood, 0.0))

    def body(mask_rows):
        rz = zsr_rows()
        ra = ce_rows(aux_ref)
        ro = ce_rows(ood_ref)
        if mask_rows:
            # Partial last tile: discard padded rows with a select AFTER the
            # per-row math so Inf/NaN from garbage padding never enters sums.
            row = jax.lax.broadcasted_iota(jnp.int32, (tb, 1), 0)
            valid = (i * tb + row) < batch
            zero = jnp.zeros((), jnp.float32)
            rz = jnp.where(valid, rz, zero)
            ra = jnp.where(valid, ra, zero)
            ro = jnp.where(valid, ro, zero)
        emit(jnp.sum(rz), jnp.sum(ra), jnp.sum(ro))

    if batch % tb == 0:
        body(False)                          # no masking anywhere
    else:
        last = pl.num_programs(0) - 1

        @pl.when(i != last)
        def _():
            body(False)                      # unmasked fast path (full tiles)

        @pl.when(i == last)
        def _():
            body(True)                       # masked path only on last tile


def _vmem_capacity_bytes():
    try:
        return int(pltpu.get_tpu_info().vmem_capacity_bytes)
    except Exception:                         # pragma: no cover - fallback
        return 128 * 1024 * 1024              # v5e/v6e physical VMEM


def _choose_tiling(batch, n_classes, itemsize):
    """Generation-aware (tile_rows, vmem_limit_bytes)."""
    vmem_cap = _vmem_capacity_bytes()         # 128 MiB v5e/v6e, 64 MiB v7x
    budget = int(0.65 * vmem_cap)             # pipeline bufs + f32 temporaries
    vmem_limit = int(0.85 * vmem_cap)
    # 2 pipeline buffers x 3 logit streams (native dtype) + ~4 C-wide f32
    # temporaries (select / shifted / exp / per-row) live inside the body.
    per_row = 2 * 3 * n_classes * itemsize + 4 * n_classes * 4
    tb = budget // max(per_row, 1)
    tb = max(8, min((tb // 8) * 8, 16384))
    # Keep >= 2 grid steps so the "parallel" axis feeds both TensorCores on
    # v7x and BlockSpec double-buffering actually overlaps DMA with compute.
    if batch > 8:
        two_tile_cap = ((pl.cdiv(batch, 2) + 7) // 8) * 8
        tb = min(tb, two_tile_cap)
    return int(tb), int(vmem_limit)


def loss_forward(label, logits, feats, *, l_ood_weight, tile_rows=None):
    """Pallas equivalent of Loss.forward. Returns (total, L_zsr, L_ood, L_aux)."""
    ood_logit, zsr_logit, zsr_logit_aux = logits[0], logits[1], logits[2]
    _ = feats[1]  # zsr_x is read in the PyTorch forward but unused by the loss

    B, C = zsr_logit.shape
    itemsize = max(ood_logit.dtype.itemsize,
                   zsr_logit.dtype.itemsize,
                   zsr_logit_aux.dtype.itemsize)
    tb_auto, vmem_limit = _choose_tiling(B, C, itemsize)
    tb = int(tile_rows) if tile_rows is not None else tb_auto
    num_tiles = pl.cdiv(B, tb)

    # Resident label block: pad to the grid extent (tiny: 4 bytes/row).
    padded_b = num_tiles * tb
    label2d = jnp.zeros((padded_b, 1), jnp.int32).at[:B, 0].set(
        label.astype(jnp.int32))

    kernel = functools.partial(_loss_tile_kernel, batch=B)
    partials = pl.pallas_call(
        kernel,
        out_shape=jax.ShapeDtypeStruct((num_tiles, 8, 128), jnp.float32),
        grid=(num_tiles,),
        in_specs=[
            pl.BlockSpec((padded_b, 1), lambda i: (0, 0)),   # label (resident)
            pl.BlockSpec((tb, C), lambda i: (i, 0)),         # zsr_logit
            pl.BlockSpec((tb, C), lambda i: (i, 0)),         # zsr_logit_aux
            pl.BlockSpec((tb, C), lambda i: (i, 0)),         # ood_logit
        ],
        out_specs=pl.BlockSpec((1, 8, 128), lambda i: (i, 0, 0)),
        compiler_params=pltpu.CompilerParams(
            dimension_semantics=("parallel",),
            vmem_limit_bytes=vmem_limit,
        ),
    )(label2d, zsr_logit, zsr_logit_aux, ood_logit)

    # Tiny final reduce + weighting in plain JAX (keeps kernel weight-agnostic).
    sums = jnp.sum(partials[:, :3, 0], axis=0)       # [S_zsr_gather, S_aux, S_ood]
    inv_b = jnp.float32(1.0 / B)
    l_zsr_gather = sums[0] * inv_b
    l_aux = sums[1] * inv_b
    l_ood = sums[2] * inv_b
    l_zsr = l_zsr_gather + l_aux
    total = l_zsr + jnp.float32(l_ood_weight) * l_ood
    return total, l_zsr, l_ood, l_aux


def _reference(label, logits, feats, l_ood_weight):
    """Pure-JAX reference mirroring the PyTorch module (f32 math)."""
    ood_logit, zsr_logit, zsr_logit_aux = (x.astype(jnp.float32) for x in logits)
    one_hot = jax.nn.one_hot(label, zsr_logit.shape[1], dtype=jnp.float32)
    l_zsr_gather = jnp.mean(1.0 - jnp.sum(zsr_logit * one_hot, axis=-1))

    def ce(x):
        return jnp.mean(jax.nn.logsumexp(x, axis=-1) - jnp.sum(x * one_hot, axis=-1))

    l_aux = ce(zsr_logit_aux)
    l_ood = ce(ood_logit)
    l_zsr = l_zsr_gather + l_aux
    total = l_zsr + l_ood_weight * l_ood
    return total, l_zsr, l_ood, l_aux


def _make_inputs(key, B, C, D, dtype=jnp.float32):
    k_lab, k_ood, k_zsr, k_aux, k_f0, k_f1 = jax.random.split(key, 6)
    label = jax.random.randint(k_lab, (B,), 0, C, dtype=jnp.int32)
    logits = (jax.random.normal(k_ood, (B, C), dtype=dtype),
              jax.random.normal(k_zsr, (B, C), dtype=dtype),
              jax.random.normal(k_aux, (B, C), dtype=dtype))
    feats = (jax.random.normal(k_f0, (B, D), dtype=jnp.float32),
             jax.random.normal(k_f1, (B, D), dtype=jnp.float32))
    return label, logits, feats


if __name__ == "__main__":
    L_OOD_WEIGHT = 0.3             # stands in for args.L_ood
    key = jax.random.PRNGKey(0)
    k0, k1 = jax.random.split(key)

    # --- Case A: f32 logits, B=20, C=128 ---
    label, logits, feats = _make_inputs(k0, B=20, C=128, D=32)
    ref = _reference(label, logits, feats, L_OOD_WEIGHT)

    # 1) Auto-sized tiling (>=2 tiles, partial last tile -> masking path).
    out_auto = loss_forward(label, logits, feats, l_ood_weight=L_OOD_WEIGHT)
    jax.block_until_ready(out_auto)
    for got, want in zip(out_auto, ref):
        assert jnp.allclose(got, want, rtol=2e-5, atol=1e-4), (got, want)

    # 2) Explicit small tiles (3 tiles, last has 4 valid rows).
    out_tiled = loss_forward(label, logits, feats,
                             l_ood_weight=L_OOD_WEIGHT, tile_rows=8)
    jax.block_until_ready(out_tiled)
    for got, want in zip(out_tiled, ref):
        assert jnp.allclose(got, want, rtol=2e-5, atol=1e-4), (got, want)

    # 3) Native bf16 logits at the boundary (HBM-bound win); kernel keeps
    #    select/max/shift in bf16 and accumulates in f32.
    logits_bf16 = tuple(x.astype(jnp.bfloat16) for x in logits)
    out_bf16 = loss_forward(label, logits_bf16, feats,
                            l_ood_weight=L_OOD_WEIGHT, tile_rows=8)
    jax.block_until_ready(out_bf16)
    for got, want in zip(out_bf16, ref):
        assert jnp.allclose(got, want, rtol=5e-2, atol=5e-2), (got, want)

    # --- Case B: C not a multiple of 128 (lane padding must stay out of
    #     the max / sum-exp reductions) + partial last tile. ---
    label_b, logits_b, feats_b = _make_inputs(k1, B=12, C=130, D=32)
    ref_b = _reference(label_b, logits_b, feats_b, L_OOD_WEIGHT)
    out_b = loss_forward(label_b, logits_b, feats_b,
                         l_ood_weight=L_OOD_WEIGHT, tile_rows=8)
    jax.block_until_ready(out_b)
    for got, want in zip(out_b, ref_b):
        assert jnp.allclose(got, want, rtol=2e-5, atol=1e-4), (got, want)

    print("KERNEL_OK")
</pallas_src>

<mosaic_0001>
module attributes {stable_mosaic.version = 11 : i64} {
  func.func @_loss_tile_kernel(%arg0: i32, %arg1: memref<32x1xi32, #tpu.memory_space<vmem>>, %arg2: memref<16x128xf32, #tpu.memory_space<vmem>>, %arg3: memref<16x128xf32, #tpu.memory_space<vmem>>, %arg4: memref<16x128xf32, #tpu.memory_space<vmem>>, %arg5: memref<1x8x128xf32, #tpu.memory_space<vmem>>) attributes {dimension_semantics = [#tpu.dimension_semantics<parallel>], iteration_bounds = array<i64: 2>, scalar_prefetch = 0 : i64, scratch_operands = 0 : i64, tpu.core_type = #tpu.core_type<tc>, window_params = [{pipeline_mode = #tpu.pipeline_mode<synchronous>, transform_indices = @transform_0, window_bounds = array<i64: 32, 1>}, {transform_indices = @transform_1, window_bounds = array<i64: 16, 128>}, {transform_indices = @transform_2, window_bounds = array<i64: 16, 128>}, {transform_indices = @transform_3, window_bounds = array<i64: 16, 128>}, {transform_indices = @transform_4, window_bounds = array<i64: 1, 8, 128>}]} {
    %c16_i32 = arith.constant 16 : i32
    %0 = arith.muli %arg0, %c16_i32 : i32
    %1 = tpu.assume_multiple %0, 8 : i32
    %2 = arith.index_cast %1 : i32 to index
    %c0 = arith.constant 0 : index
    %3 = vector.load %arg1[%2, %c0] : memref<32x1xi32, #tpu.memory_space<vmem>>, vector<16x1xi32>
    %4 = tpu.iota {dimensions = array<i32: 1>} : vector<16x128xi32>
    %5 = vector.broadcast %3 : vector<16x1xi32> to vector<16x128xi32>
    %6 = arith.cmpi eq, %4, %5 : vector<16x128xi32>
    %c1_i32 = arith.constant 1 : i32
    %7 = arith.cmpi ne, %arg0, %c1_i32 : i32
    %8 = arith.extui %7 : i1 to i32
    %c0_i32 = arith.constant 0 : i32
    %9 = arith.cmpi ne, %8, %c0_i32 : i32
    scf.if %9 {
      %c0_2 = arith.constant 0 : index
      %c0_3 = arith.constant 0 : index
      %13 = vector.load %arg2[%c0_2, %c0_3] : memref<16x128xf32, #tpu.memory_space<vmem>>, vector<16x128xf32>
      %cst = arith.constant 0.000000e+00 : f32
      %14 = vector.broadcast %cst : f32 to vector<16x128xf32>
      %15 = arith.select %6, %13, %14 : vector<16x128xi1>, vector<16x128xf32>
      %cst_4 = arith.constant dense<0.000000e+00> : vector<16xf32>
      %16 = vector.multi_reduction <add>, %15, %cst_4 [1] : vector<16x128xf32> to vector<16xf32>
      %17 = vector.shape_cast %16 : vector<16xf32> to vector<16x1xf32>
      %cst_5 = arith.constant 1.000000e+00 : f32
      %18 = vector.broadcast %cst_5 : f32 to vector<16x1xf32>
      %19 = arith.subf %18, %17 : vector<16x1xf32>
      %c0_6 = arith.constant 0 : index
      %c0_7 = arith.constant 0 : index
      %20 = vector.load %arg3[%c0_6, %c0_7] : memref<16x128xf32, #tpu.memory_space<vmem>>, vector<16x128xf32>
      %cst_8 = arith.constant dense<0xFF800000> : vector<16xf32>
      %21 = vector.multi_reduction <maximumf>, %20, %cst_8 [1] : vector<16x128xf32> to vector<16xf32>
      %22 = vector.shape_cast %21 : vector<16xf32> to vector<16x1xf32>
      %23 = vector.broadcast %22 : vector<16x1xf32> to vector<16x128xf32>
      %24 = arith.subf %20, %23 : vector<16x128xf32>
      %25 = math.exp %24 : vector<16x128xf32>
      %cst_9 = arith.constant dense<0.000000e+00> : vector<16xf32>
      %26 = vector.multi_reduction <add>, %25, %cst_9 [1] : vector<16x128xf32> to vector<16xf32>
      %27 = vector.shape_cast %26 : vector<16xf32> to vector<16x1xf32>
      %28 = math.log %27 : vector<16x1xf32>
      %29 = arith.addf %28, %22 : vector<16x1xf32>
      %cst_10 = arith.constant 0.000000e+00 : f32
      %30 = vector.broadcast %cst_10 : f32 to vector<16x128xf32>
      %31 = arith.select %6, %20, %30 : vector<16x128xi1>, vector<16x128xf32>
      %cst_11 = arith.constant dense<0.000000e+00> : vector<16xf32>
      %32 = vector.multi_reduction <add>, %31, %cst_11 [1] : vector<16x128xf32> to vector<16xf32>
      %33 = vector.shape_cast %32 : vector<16xf32> to vector<16x1xf32>
      %34 = arith.subf %29, %33 : vector<16x1xf32>
      %c0_12 = arith.constant 0 : index
      %c0_13 = arith.constant 0 : index
      %35 = vector.load %arg4[%c0_12, %c0_13] : memref<16x128xf32, #tpu.memory_space<vmem>>, vector<16x128xf32>
      %cst_14 = arith.constant dense<0xFF800000> : vector<16xf32>
      %36 = vector.multi_reduction <maximumf>, %35, %cst_14 [1] : vector<16x128xf32> to vector<16xf32>
      %37 = vector.shape_cast %36 : vector<16xf32> to vector<16x1xf32>
      %38 = vector.broadcast %37 : vector<16x1xf32> to vector<16x128xf32>
      %39 = arith.subf %35, %38 : vector<16x128xf32>
      %40 = math.exp %39 : vector<16x128xf32>
      %cst_15 = arith.constant dense<0.000000e+00> : vector<16xf32>
      %41 = vector.multi_reduction <add>, %40, %cst_15 [1] : vector<16x128xf32> to vector<16xf32>
      %42 = vector.shape_cast %41 : vector<16xf32> to vector<16x1xf32>
      %43 = math.log %42 : vector<16x1xf32>
      %44 = arith.addf %43, %37 : vector<16x1xf32>
      %cst_16 = arith.constant 0.000000e+00 : f32
      %45 = vector.broadcast %cst_16 : f32 to vector<16x128xf32>
      %46 = arith.select %6, %35, %45 : vector<16x128xi1>, vector<16x128xf32>
      %cst_17 = arith.constant dense<0.000000e+00> : vector<16xf32>
      %47 = vector.multi_reduction <add>, %46, %cst_17 [1] : vector<16x128xf32> to vector<16xf32>
      %48 = vector.shape_cast %47 : vector<16xf32> to vector<16x1xf32>
      %49 = arith.subf %44, %48 : vector<16x1xf32>
      %50 = vector.shape_cast %19 : vector<16x1xf32> to vector<1x16x1xf32>
      %cst_18 = arith.constant dense<0.000000e+00> : vector<1xf32>
      %51 = vector.multi_reduction <add>, %50, %cst_18 [1, 2] : vector<1x16x1xf32> to vector<1xf32>
      %52 = vector.shape_cast %51 : vector<1xf32> to vector<1x1x1xf32>
      %53 = vector.extract %52[0, 0, 0] : f32 from vector<1x1x1xf32>
      %54 = vector.shape_cast %34 : vector<16x1xf32> to vector<1x16x1xf32>
      %cst_19 = arith.constant dense<0.000000e+00> : vector<1xf32>
      %55 = vector.multi_reduction <add>, %54, %cst_19 [1, 2] : vector<1x16x1xf32> to vector<1xf32>
      %56 = vector.shape_cast %55 : vector<1xf32> to vector<1x1x1xf32>
      %57 = vector.extract %56[0, 0, 0] : f32 from vector<1x1x1xf32>
      %58 = vector.shape_cast %49 : vector<16x1xf32> to vector<1x16x1xf32>
      %cst_20 = arith.constant dense<0.000000e+00> : vector<1xf32>
      %59 = vector.multi_reduction <add>, %58, %cst_20 [1, 2] : vector<1x16x1xf32> to vector<1xf32>
      %60 = vector.shape_cast %59 : vector<1xf32> to vector<1x1x1xf32>
      %61 = vector.extract %60[0, 0, 0] : f32 from vector<1x1x1xf32>
      %62 = tpu.iota {dimensions = array<i32: 0>} : vector<8x128xi32>
      %c0_i32_21 = arith.constant 0 : i32
      %63 = vector.broadcast %c0_i32_21 : i32 to vector<8x128xi32>
      %64 = arith.cmpi eq, %62, %63 : vector<8x128xi32>
      %cst_22 = arith.constant 0.000000e+00 : f32
      %65 = vector.broadcast %53 : f32 to vector<8x128xf32>
      %66 = vector.broadcast %cst_22 : f32 to vector<8x128xf32>
      %67 = arith.select %64, %65, %66 : vector<8x128xi1>, vector<8x128xf32>
      %c1_i32_23 = arith.constant 1 : i32
      %68 = vector.broadcast %c1_i32_23 : i32 to vector<8x128xi32>
      %69 = arith.cmpi eq, %62, %68 : vector<8x128xi32>
      %cst_24 = arith.constant 0.000000e+00 : f32
      %70 = vector.broadcast %57 : f32 to vector<8x128xf32>
      %71 = vector.broadcast %cst_24 : f32 to vector<8x128xf32>
      %72 = arith.select %69, %70, %71 : vector<8x128xi1>, vector<8x128xf32>
      %73 = arith.addf %67, %72 : vector<8x128xf32>
      %c2_i32 = arith.constant 2 : i32
      %74 = vector.broadcast %c2_i32 : i32 to vector<8x128xi32>
      %75 = arith.cmpi eq, %62, %74 : vector<8x128xi32>
      %cst_25 = arith.constant 0.000000e+00 : f32
      %76 = vector.broadcast %61 : f32 to vector<8x128xf32>
      %77 = vector.broadcast %cst_25 : f32 to vector<8x128xf32>
      %78 = arith.select %75, %76, %77 : vector<8x128xi1>, vector<8x128xf32>
      %79 = arith.addf %73, %78 : vector<8x128xf32>
      %c0_26 = arith.constant 0 : index
      %c0_27 = arith.constant 0 : index
      %c0_28 = arith.constant 0 : index
      %80 = vector.load %arg5[%c0_26, %c0_27, %c0_28] : memref<1x8x128xf32, #tpu.memory_space<vmem>>, vector<1x8x128xf32>
      %81 = vector.shape_cast %80 : vector<1x8x128xf32> to vector<8x128xf32>
      %82 = vector.shape_cast %79 : vector<8x128xf32> to vector<1x8x128xf32>
      tpu.vector_store %arg5[%c0_26, %c0_27, %c0_28], %82 {strides = array<i32>} : memref<1x8x128xf32, #tpu.memory_space<vmem>>, vector<1x8x128xf32>,
    } else {
    }
    %c1_i32_0 = arith.constant 1 : i32
    %10 = arith.cmpi eq, %arg0, %c1_i32_0 : i32
    %11 = arith.extui %10 : i1 to i32
    %c0_i32_1 = arith.constant 0 : i32
    %12 = arith.cmpi ne, %11, %c0_i32_1 : i32
    scf.if %12 {
      %c0_2 = arith.constant 0 : index
      %c0_3 = arith.constant 0 : index
      %13 = vector.load %arg2[%c0_2, %c0_3] : memref<16x128xf32, #tpu.memory_space<vmem>>, vector<16x128xf32>
      %cst = arith.constant 0.000000e+00 : f32
      %14 = vector.broadcast %cst : f32 to vector<16x128xf32>
      %15 = arith.select %6, %13, %14 : vector<16x128xi1>, vector<16x128xf32>
      %cst_4 = arith.constant dense<0.000000e+00> : vector<16xf32>
      %16 = vector.multi_reduction <add>, %15, %cst_4 [1] : vector<16x128xf32> to vector<16xf32>
      %17 = vector.shape_cast %16 : vector<16xf32> to vector<16x1xf32>
      %cst_5 = arith.constant 1.000000e+00 : f32
      %18 = vector.broadcast %cst_5 : f32 to vector<16x1xf32>
      %19 = arith.subf %18, %17 : vector<16x1xf32>
      %c0_6 = arith.constant 0 : index
      %c0_7 = arith.constant 0 : index
      %20 = vector.load %arg3[%c0_6, %c0_7] : memref<16x128xf32, #tpu.memory_space<vmem>>, vector<16x128xf32>
      %cst_8 = arith.constant dense<0xFF800000> : vector<16xf32>
      %21 = vector.multi_reduction <maximumf>, %20, %cst_8 [1] : vector<16x128xf32> to vector<16xf32>
      %22 = vector.shape_cast %21 : vector<16xf32> to vector<16x1xf32>
      %23 = vector.broadcast %22 : vector<16x1xf32> to vector<16x128xf32>
      %24 = arith.subf %20, %23 : vector<16x128xf32>
      %25 = math.exp %24 : vector<16x128xf32>
      %cst_9 = arith.constant dense<0.000000e+00> : vector<16xf32>
      %26 = vector.multi_reduction <add>, %25, %cst_9 [1] : vector<16x128xf32> to vector<16xf32>
      %27 = vector.shape_cast %26 : vector<16xf32> to vector<16x1xf32>
      %28 = math.log %27 : vector<16x1xf32>
      %29 = arith.addf %28, %22 : vector<16x1xf32>
      %cst_10 = arith.constant 0.000000e+00 : f32
      %30 = vector.broadcast %cst_10 : f32 to vector<16x128xf32>
      %31 = arith.select %6, %20, %30 : vector<16x128xi1>, vector<16x128xf32>
      %cst_11 = arith.constant dense<0.000000e+00> : vector<16xf32>
      %32 = vector.multi_reduction <add>, %31, %cst_11 [1] : vector<16x128xf32> to vector<16xf32>
      %33 = vector.shape_cast %32 : vector<16xf32> to vector<16x1xf32>
      %34 = arith.subf %29, %33 : vector<16x1xf32>
      %c0_12 = arith.constant 0 : index
      %c0_13 = arith.constant 0 : index
      %35 = vector.load %arg4[%c0_12, %c0_13] : memref<16x128xf32, #tpu.memory_space<vmem>>, vector<16x128xf32>
      %cst_14 = arith.constant dense<0xFF800000> : vector<16xf32>
      %36 = vector.multi_reduction <maximumf>, %35, %cst_14 [1] : vector<16x128xf32> to vector<16xf32>
      %37 = vector.shape_cast %36 : vector<16xf32> to vector<16x1xf32>
      %38 = vector.broadcast %37 : vector<16x1xf32> to vector<16x128xf32>
      %39 = arith.subf %35, %38 : vector<16x128xf32>
      %40 = math.exp %39 : vector<16x128xf32>
      %cst_15 = arith.constant dense<0.000000e+00> : vector<16xf32>
      %41 = vector.multi_reduction <add>, %40, %cst_15 [1] : vector<16x128xf32> to vector<16xf32>
      %42 = vector.shape_cast %41 : vector<16xf32> to vector<16x1xf32>
      %43 = math.log %42 : vector<16x1xf32>
      %44 = arith.addf %43, %37 : vector<16x1xf32>
      %cst_16 = arith.constant 0.000000e+00 : f32
      %45 = vector.broadcast %cst_16 : f32 to vector<16x128xf32>
      %46 = arith.select %6, %35, %45 : vector<16x128xi1>, vector<16x128xf32>
      %cst_17 = arith.constant dense<0.000000e+00> : vector<16xf32>
      %47 = vector.multi_reduction <add>, %46, %cst_17 [1] : vector<16x128xf32> to vector<16xf32>
      %48 = vector.shape_cast %47 : vector<16xf32> to vector<16x1xf32>
      %49 = arith.subf %44, %48 : vector<16x1xf32>
      %50 = tpu.iota {dimensions = array<i32: 0>} : vector<16x1xi32>
      %c16_i32_18 = arith.constant 16 : i32
      %51 = arith.muli %arg0, %c16_i32_18 : i32
      %52 = vector.broadcast %51 : i32 to vector<16x1xi32>
      %53 = arith.addi %52, %50 : vector<16x1xi32>
      %c20_i32 = arith.constant 20 : i32
      %54 = vector.broadcast %c20_i32 : i32 to vector<16x1xi32>
      %55 = arith.cmpi slt, %53, %54 : vector<16x1xi32>
      %cst_19 = arith.constant 0.000000e+00 : f32
      %56 = vector.broadcast %cst_19 : f32 to vector<16x1xf32>
      %57 = arith.select %55, %19, %56 : vector<16x1xi1>, vector<16x1xf32>
      %cst_20 = arith.constant 0.000000e+00 : f32
      %58 = vector.broadcast %cst_20 : f32 to vector<16x1xf32>
      %59 = arith.select %55, %34, %58 : vector<16x1xi1>, vector<16x1xf32>
      %cst_21 = arith.constant 0.000000e+00 : f32
      %60 = vector.broadcast %cst_21 : f32 to vector<16x1xf32>
      %61 = arith.select %55, %49, %60 : vector<16x1xi1>, vector<16x1xf32>
      %62 = vector.shape_cast %57 : vector<16x1xf32> to vector<1x16x1xf32>
      %cst_22 = arith.constant dense<0.000000e+00> : vector<1xf32>
      %63 = vector.multi_reduction <add>, %62, %cst_22 [1, 2] : vector<1x16x1xf32> to vector<1xf32>
      %64 = vector.shape_cast %63 : vector<1xf32> to vector<1x1x1xf32>
      %65 = vector.extract %64[0, 0, 0] : f32 from vector<1x1x1xf32>
      %66 = vector.shape_cast %59 : vector<16x1xf32> to vector<1x16x1xf32>
      %cst_23 = arith.constant dense<0.000000e+00> : vector<1xf32>
      %67 = vector.multi_reduction <add>, %66, %cst_23 [1, 2] : vector<1x16x1xf32> to vector<1xf32>
      %68 = vector.shape_cast %67 : vector<1xf32> to vector<1x1x1xf32>
      %69 = vector.extract %68[0, 0, 0] : f32 from vector<1x1x1xf32>
      %70 = vector.shape_cast %61 : vector<16x1xf32> to vector<1x16x1xf32>
      %cst_24 = arith.constant dense<0.000000e+00> : vector<1xf32>
      %71 = vector.multi_reduction <add>, %70, %cst_24 [1, 2] : vector<1x16x1xf32> to vector<1xf32>
      %72 = vector.shape_cast %71 : vector<1xf32> to vector<1x1x1xf32>
      %73 = vector.extract %72[0, 0, 0] : f32 from vector<1x1x1xf32>
      %74 = tpu.iota {dimensions = array<i32: 0>} : vector<8x128xi32>
      %c0_i32_25 = arith.constant 0 : i32
      %75 = vector.broadcast %c0_i32_25 : i32 to vector<8x128xi32>
      %76 = arith.cmpi eq, %74, %75 : vector<8x128xi32>
      %cst_26 = arith.constant 0.000000e+00 : f32
      %77 = vector.broadcast %65 : f32 to vector<8x128xf32>
      %78 = vector.broadcast %cst_26 : f32 to vector<8x128xf32>
      %79 = arith.select %76, %77, %78 : vector<8x128xi1>, vector<8x128xf32>
      %c1_i32_27 = arith.constant 1 : i32
      %80 = vector.broadcast %c1_i32_27 : i32 to vector<8x128xi32>
      %81 = arith.cmpi eq, %74, %80 : vector<8x128xi32>
      %cst_28 = arith.constant 0.000000e+00 : f32
      %82 = vector.broadcast %69 : f32 to vector<8x128xf32>
      %83 = vector.broadcast %cst_28 : f32 to vector<8x128xf32>
      %84 = arith.select %81, %82, %83 : vector<8x128xi1>, vector<8x128xf32>
      %85 = arith.addf %79, %84 : vector<8x128xf32>
      %c2_i32 = arith.constant 2 : i32
      %86 = vector.broadcast %c2_i32 : i32 to vector<8x128xi32>
      %87 = arith.cmpi eq, %74, %86 : vector<8x128xi32>
      %cst_29 = arith.constant 0.000000e+00 : f32
      %88 = vector.broadcast %73 : f32 to vector<8x128xf32>
      %89 = vector.broadcast %cst_29 : f32 to vector<8x128xf32>
      %90 = arith.select %87, %88, %89 : vector<8x128xi1>, vector<8x128xf32>
      %91 = arith.addf %85, %90 : vector<8x128xf32>
      %c0_30 = arith.constant 0 : index
      %c0_31 = arith.constant 0 : index
      %c0_32 = arith.constant 0 : index
      %92 = vector.load %arg5[%c0_30, %c0_31, %c0_32] : memref<1x8x128xf32, #tpu.memory_space<vmem>>, vector<1x8x128xf32>
      %93 = vector.shape_cast %92 : vector<1x8x128xf32> to vector<8x128xf32>
      %94 = vector.shape_cast %91 : vector<8x128xf32> to vector<1x8x128xf32>
      tpu.vector_store %arg5[%c0_30, %c0_31, %c0_32], %94 {strides = array<i32>} : memref<1x8x128xf32, #tpu.memory_space<vmem>>, vector<1x8x128xf32>,
    } else {
    }
    return
  }
  func.func @transform_0(%arg0: i32) -> (i32, i32) {
    %c0_i32 = arith.constant 0 : i32
    %c0_i32_0 = arith.constant 0 : i32
    %c0_i32_1 = arith.constant 0 : i32
    return %c0_i32, %c0_i32_0 : i32, i32
  }
  func.func @transform_1(%arg0: i32) -> (i32, i32) {
    %c0_i32 = arith.constant 0 : i32
    %c0_i32_0 = arith.constant 0 : i32
    return %arg0, %c0_i32 : i32, i32
  }
  func.func @transform_2(%arg0: i32) -> (i32, i32) {
    %c0_i32 = arith.constant 0 : i32
    %c0_i32_0 = arith.constant 0 : i32
    return %arg0, %c0_i32 : i32, i32
  }
  func.func @transform_3(%arg0: i32) -> (i32, i32) {
    %c0_i32 = arith.constant 0 : i32
    %c0_i32_0 = arith.constant 0 : i32
    return %arg0, %c0_i32 : i32, i32
  }
  func.func @transform_4(%arg0: i32) -> (i32, i32, i32) {
    %c0_i32 = arith.constant 0 : i32
    %c0_i32_0 = arith.constant 0 : i32
    %c0_i32_1 = arith.constant 0 : i32
    return %arg0, %c0_i32, %c0_i32_0 : i32, i32, i32
  }
}

</mosaic_0001>

<llo_original>
// kernel: tpu_custom_call.1
$region0: #{tpu_custom_call.1}
  #allocation0 [shape = 'u32[]', space=smem, size = 0x4, offset = 0x4, fixed_abs, tag = 'smem constant byte address 0x4 - core index']
  #allocation1 [shape = 'u32[144,128]{1,0:T(1,128)}', space=vmem, size = 0x12000, scoped, tag = 'internal scratch']
  %s0 = inlined_call_operand.vmem [shape: s32[32,1], index: 0, kind: input, shape index: {}]
  %s1 = inlined_call_operand.vmem [shape: f32[20,128], index: 1, kind: input, shape index: {}]
  %s2 = inlined_call_operand.hbm [shape: f32[20,128], index: 2, kind: input, shape index: {}]
  %s3 = inlined_call_operand.hbm [shape: f32[20,128], index: 3, kind: input, shape index: {}]
  %s4 = inlined_call_operand.hbm [shape: f32[2,8,128], index: 4, kind: output, shape index: {}]
  %s5 = sld [smem:[#allocation0]]
  $region65: #{tpu_custom_call.1} parent=0
    _
  %s7 = ssub.s32 1, %s5
  %s8 = scalar_select 0, %s7, %s5
  $region1: #{tpu_custom_call.1} parent=0
    #allocation2 [shape = 'u8[16384]{0}', space=vmem, size = 0x4000, scoped, tag = 'input window, operand 2']
    #allocation3 [shape = 's32[2]{0}', space=sflag, size = 0x8, scoped, tag = 'scoped memory for tpu_custom_call.1']
    #allocation4 [shape = 's32[2]{0}', space=sflag, size = 0x8, scoped, tag = 'scoped memory for tpu_custom_call.1']
    #allocation5 [shape = 'u8[16384]{0}', space=vmem, size = 0x4000, scoped, tag = 'input window, operand 3']
    #allocation6 [shape = 's32[2]{0}', space=sflag, size = 0x8, scoped, tag = 'scoped memory for tpu_custom_call.1']
    #allocation7 [shape = 'u8[8192]{0}', space=vmem, size = 0x2000, scoped, tag = 'output window, operand 0']
    %9 = vsyncpa [#allocation3], 0
    %s10 = scalar_lea.sflag [#allocation3], 1
    %11 = vsyncpa %s10, 0
    %12 = vsyncpa [#allocation6], 0
    %s13 = scalar_lea.sflag [#allocation6], 1
    %14 = vsyncpa %s13, 0
    %15 = vsyncpa [#allocation4], 0
    %s16 = scalar_lea.sflag [#allocation4], 1
    %17 = vsyncpa %s16, 0
    loop: start=0, step=1, limit=4
    $region2: #{tpu_custom_call.1} parent=1 // loop_pre_header
      _
    $region3: #{tpu_custom_call.1} parent=1 // loop_header
      %s19 = sphi 0, %s23
      %p20 = scmp.ge.s32.totalorder %s19, 4
      %s27 = sphi 0, %s27
      %s29 = sphi 0, %s27
      %s30 = sphi 0, %s29
      %s44 = sphi 0, %s30
      %s50 = sphi 0, %s52
      %s53 = sphi 0, %s50
      %s54 = sphi 0, %s53
      %s70 = sphi 0, %s54
      %s76 = sphi 0, %s78
      %s79 = sphi 0, %s76
      %s80 = sphi 0, %s79
      %s96 = sphi 0, %s80
      %s102 = sphi 0, %s104
      %s105 = sphi 0, %s102
      %s106 = sphi 0, %s105
      %s122 = sphi 0, %s106
      %s128 = sphi 0, %s130
      %s131 = sphi 0, %s128
      %s132 = sphi 0, %s131
      %s148 = sphi 0, %s132
    $region4: #{tpu_custom_call.1} parent=1 // loop_header_branch
      %22 = sbr.rel (%p20) target = $region8
    $region5: #{tpu_custom_call.1} parent=1 // loop_body
      %s24 = ssub.s32 %s19, 1
      %s25 = ssub.s32 %s19, 2
      %s26 = sadd.s32 %s19, 1
      %s28 = sadd.s32 %s27, 1
      %p31 = scmp.eq.s32.totalorder %s19, 1
      %p32 = scmp.ne.s32.totalorder %s27, %s29
      %p33 = scmp.eq.s32.totalorder %s19, 0
      %p34 = por %p32, %p33
      %p35 = scmp.ne.s32.totalorder %s27, %s29
      %p36 = scmp.eq.s32.totalorder %s24, 1
      %p37 = por %p35, %p36
      %p38 = scmp.ne.s32.totalorder %s29, %s30
      %p39 = scmp.eq.s32.totalorder %s24, 0
      %p40 = por %p38, %p39
      %p41 = scmp.ne.s32.totalorder %s29, %s30
      %p42 = scmp.eq.s32.totalorder %s25, 1
      %p43 = por %p41, %p42
      %p45 = scmp.ne.s32.totalorder %s30, %s44
      %p46 = scmp.eq.s32.totalorder %s25, 0
      %p47 = por %p45, %p46
      %s48 = ssub.s32 %s19, %s26
      %p49 = scmp.eq.s32.totalorder %s48, 0
      %s51 = sadd.s32 %s50, 1
      %s52 = scalar_select %p49, %s50, %s51
      %p55 = pneg %p49
      %p56 = scmp.eq.s32.totalorder %s19, 1
      %p57 = por %p55, %p56
      %p58 = scmp.ne.s32.totalorder %s50, %s53
      %p59 = scmp.eq.s32.totalorder %s19, 0
      %p60 = por %p58, %p59
      %p61 = scmp.ne.s32.totalorder %s50, %s53
      %p62 = scmp.eq.s32.totalorder %s24, 1
      %p63 = por %p61, %p62
      %p64 = scmp.ne.s32.totalorder %s53, %s54
      %p65 = scmp.eq.s32.totalorder %s24, 0
      %p66 = por %p64, %p65
      %p67 = scmp.ne.s32.totalorder %s53, %s54
      %p68 = scmp.eq.s32.totalorder %s25, 1
      %p69 = por %p67, %p68
      %p71 = scmp.ne.s32.totalorder %s54, %s70
      %p72 = scmp.eq.s32.totalorder %s25, 0
      %p73 = por %p71, %p72
      %s74 = ssub.s32 %s19, %s26
      %p75 = scmp.eq.s32.totalorder %s74, 0
      %s77 = sadd.s32 %s76, 1
      %s78 = scalar_select %p75, %s76, %s77
      %p81 = pneg %p75
      %p82 = scmp.eq.s32.totalorder %s19, 1
      %p83 = por %p81, %p82
      %p84 = scmp.ne.s32.totalorder %s76, %s79
      %p85 = scmp.eq.s32.totalorder %s19, 0
      %p86 = por %p84, %p85
      %p87 = scmp.ne.s32.totalorder %s76, %s79
      %p88 = scmp.eq.s32.totalorder %s24, 1
      %p89 = por %p87, %p88
      %p90 = scmp.ne.s32.totalorder %s79, %s80
      %p91 = scmp.eq.s32.totalorder %s24, 0
      %p92 = por %p90, %p91
      %p93 = scmp.ne.s32.totalorder %s79, %s80
      %p94 = scmp.eq.s32.totalorder %s25, 1
      %p95 = por %p93, %p94
      %p97 = scmp.ne.s32.totalorder %s80, %s96
      %p98 = scmp.eq.s32.totalorder %s25, 0
      %p99 = por %p97, %p98
      %s100 = ssub.s32 %s19, %s26
      %p101 = scmp.eq.s32.totalorder %s100, 0
      %s103 = sadd.s32 %s102, 1
      %s104 = scalar_select %p101, %s102, %s103
      %p107 = pneg %p101
      %p108 = scmp.eq.s32.totalorder %s19, 1
      %p109 = por %p107, %p108
      %p110 = scmp.ne.s32.totalorder %s102, %s105
      %p111 = scmp.eq.s32.totalorder %s19, 0
      %p112 = por %p110, %p111
      %p113 = scmp.ne.s32.totalorder %s102, %s105
      %p114 = scmp.eq.s32.totalorder %s24, 1
      %p115 = por %p113, %p114
      %p116 = scmp.ne.s32.totalorder %s105, %s106
      %p117 = scmp.eq.s32.totalorder %s24, 0
      %p118 = por %p116, %p117
      %p119 = scmp.ne.s32.totalorder %s105, %s106
      %p120 = scmp.eq.s32.totalorder %s25, 1
      %p121 = por %p119, %p120
      %p123 = scmp.ne.s32.totalorder %s106, %s122
      %p124 = scmp.eq.s32.totalorder %s25, 0
      %p125 = por %p123, %p124
      %s126 = ssub.s32 %s19, %s26
      %p127 = scmp.eq.s32.totalorder %s126, 0
      %s129 = sadd.s32 %s128, 1
      %s130 = scalar_select %p127, %s128, %s129
      %p133 = pneg %p127
      %p134 = scmp.eq.s32.totalorder %s19, 1
      %p135 = por %p133, %p134
      %p136 = scmp.ne.s32.totalorder %s128, %s131
      %p137 = scmp.eq.s32.totalorder %s19, 0
      %p138 = por %p136, %p137
      %p139 = scmp.ne.s32.totalorder %s128, %s131
      %p140 = scmp.eq.s32.totalorder %s24, 1
      %p141 = por %p139, %p140
      %p142 = scmp.ne.s32.totalorder %s131, %s132
      %p143 = scmp.eq.s32.totalorder %s24, 0
      %p144 = por %p142, %p143
      %p145 = scmp.ne.s32.totalorder %s131, %s132
      %p146 = scmp.eq.s32.totalorder %s25, 1
      %p147 = por %p145, %p146
      %p149 = scmp.ne.s32.totalorder %s132, %s148
      %p150 = scmp.eq.s32.totalorder %s25, 0
      %p151 = por %p149, %p150
      %p152 = scmp.le.s32.totalorder 1, %s19
      %p153 = scmp.lt.s32.totalorder %s19, 3
      %p154 = pnand %p152, %p153
      %p155 = pneg %p154
      // Predicated region
      $region9: #{tpu_custom_call.1} parent=5 // pred_check
        _
      $region10: #{tpu_custom_call.1} parent=5 // pred_check_branch
        %157 = sbr.rel (%p154) target = $region12
      $region11: #{tpu_custom_call.1} parent=5 // pred_region
        %s158 = ssub.s32 %s19, 1
        // Predicated region
        $region13: #{tpu_custom_call.1} parent=11 // pred_check
          %p159 = pneg %p40
        $region14: #{tpu_custom_call.1} parent=11 // pred_check_branch
          %161 = sbr.rel (%p159) target = $region16
        $region15: #{tpu_custom_call.1} parent=11 // pred_region
          _
        $region16: #{tpu_custom_call.1} parent=11 // pred_fallthru
          _
      $region12: #{tpu_custom_call.1} parent=5 // pred_fallthru
        _
      %p162 = scmp.lt.s32.totalorder %s19, 2
      // Predicated region
      $region17: #{tpu_custom_call.1} parent=5 // pred_check
        %p163 = pneg %p162
      $region18: #{tpu_custom_call.1} parent=5 // pred_check_branch
        %165 = sbr.rel (%p163) target = $region20
      $region19: #{tpu_custom_call.1} parent=5 // pred_region
        // Predicated region
        $region21: #{tpu_custom_call.1} parent=19 // pred_check
          %p166 = pneg %p60
        $region22: #{tpu_custom_call.1} parent=19 // pred_check_branch
          %168 = sbr.rel (%p166) target = $region24
        $region23: #{tpu_custom_call.1} parent=19 // pred_region
          %s169 = smul.u32 2, %s19
          %s170 = ssub.s32 3, %s169
          %p171 = scmp.lt.s32.totalorder %s170, 2
          %s172 = scalar_select %p171, %s170, 2
          %s173 = smul.u32 128, %s172
          %p174 = scmp.lt.s32.totalorder %s169, 2
          %s175 = scalar_select %p174, %s169, 2
          %s176 = smul.addr %s175, 8
          %s177 = scalar_lea.vmem %s1, %s176
          %s178 = smul.u32 2, %s19
          %s179 = ssub.s32 3, %s178
          %p180 = scmp.lt.s32.totalorder %s179, 2
          %s181 = scalar_select %p180, %s179, 2
          %s182 = smul.u32 128, %s181
        $region24: #{tpu_custom_call.1} parent=19 // pred_fallthru
          _
        // Predicated region
        $region25: #{tpu_custom_call.1} parent=19 // pred_check
          %p183 = pneg %p86
        $region26: #{tpu_custom_call.1} parent=19 // pred_check_branch
          %185 = sbr.rel (%p183) target = $region28
        $region27: #{tpu_custom_call.1} parent=19 // pred_region
          %s186 = sand.u32 %s76, 1
          %s187 = scalar_lea.sflag [#allocation3], %s186
          %s188 = sand.u32 %s76, 1
          %s189 = smul.addr %s188, 16
          %s190 = scalar_lea.vmem [#allocation2], %s189
          %s191 = smul.u32 2, %s19
          %s192 = ssub.s32 3, %s191
          %p193 = scmp.lt.s32.totalorder %s192, 2
          %s194 = scalar_select %p193, %s192, 2
          %s195 = smul.u32 128, %s194
          %s197 = ssub.s32 256, %s195
          %198 = vsyncadd %s187, %s197
          %p199 = scmp.ne.s32.totalorder 0, %s195
          %s200 = smul.addr %s191, 128
          %s201 = scalar_lea.hbm %s2, %s200
          %s202 = smul.u32 8, %s194
          %s203 = sshll.u32 %s190, 4
          %s204 = int_to_ptr.vmem [resolvable:$true] %s203
          %s205 = sshll.u32 %s202, 4
          %209 = dma.hbm_to_vmem [thread:$0]  (%p199), %s201, %s205, %s204, %s187, 128, 128, 8
        $region28: #{tpu_custom_call.1} parent=19 // pred_fallthru
          _
        // Predicated region
        $region29: #{tpu_custom_call.1} parent=19 // pred_check
          %p210 = pneg %p112
        $region30: #{tpu_custom_call.1} parent=19 // pred_check_branch
          %212 = sbr.rel (%p210) target = $region32
        $region31: #{tpu_custom_call.1} parent=19 // pred_region
          %s213 = sand.u32 %s102, 1
          %s214 = scalar_lea.sflag [#allocation6], %s213
          %s215 = sand.u32 %s102, 1
          %s216 = smul.addr %s215, 16
          %s217 = scalar_lea.vmem [#allocation5], %s216
          %s218 = smul.u32 2, %s19
          %s219 = ssub.s32 3, %s218
          %p220 = scmp.lt.s32.totalorder %s219, 2
          %s221 = scalar_select %p220, %s219, 2
          %s222 = smul.u32 128, %s221
          %s224 = ssub.s32 256, %s222
          %225 = vsyncadd %s214, %s224
          %p226 = scmp.ne.s32.totalorder 0, %s222
          %s227 = smul.addr %s218, 128
          %s228 = scalar_lea.hbm %s3, %s227
          %s229 = smul.u32 8, %s221
          %s230 = sshll.u32 %s217, 4
          %s231 = int_to_ptr.vmem [resolvable:$true] %s230
          %s232 = sshll.u32 %s229, 4
          %236 = dma.hbm_to_vmem [thread:$0]  (%p226), %s228, %s232, %s231, %s214, 128, 128, 8
        $region32: #{tpu_custom_call.1} parent=19 // pred_fallthru
          _
      $region20: #{tpu_custom_call.1} parent=5 // pred_fallthru
        _
      %p237 = scmp.le.s32.totalorder 1, %s19
      %p238 = scmp.lt.s32.totalorder %s19, 3
      %p239 = pnand %p237, %p238
      %p240 = pneg %p239
      // Predicated region
      $region33: #{tpu_custom_call.1} parent=5 // pred_check
        _
      $region34: #{tpu_custom_call.1} parent=5 // pred_check_branch
        %242 = sbr.rel (%p239) target = $region36
      $region35: #{tpu_custom_call.1} parent=5 // pred_region
        %s243 = ssub.s32 %s19, 1
        %s244 = sand.u32 %s79, 1
        %s245 = scalar_lea.sflag [#allocation3], %s244
        %s246 = sand.u32 %s79, 1
        %s247 = smul.addr %s246, 16
        %s248 = scalar_lea.vmem [#allocation2], %s247
        // Predicated region
        $region37: #{tpu_custom_call.1} parent=35 // pred_check
          %p249 = pneg %p92
        $region38: #{tpu_custom_call.1} parent=35 // pred_check_branch
          %251 = sbr.rel (%p249) target = $region40
        $region39: #{tpu_custom_call.1} parent=35 // pred_region
          %252 = dma.done %s245, 256
        $region40: #{tpu_custom_call.1} parent=35 // pred_fallthru
          _
        %s253 = sand.u32 %s105, 1
        %s254 = scalar_lea.sflag [#allocation6], %s253
        %s255 = sand.u32 %s105, 1
        %s256 = smul.addr %s255, 16
        %s257 = scalar_lea.vmem [#allocation5], %s256
        // Predicated region
        $region41: #{tpu_custom_call.1} parent=35 // pred_check
          %p258 = pneg %p118
        $region42: #{tpu_custom_call.1} parent=35 // pred_check_branch
          %260 = sbr.rel (%p258) target = $region44
        $region43: #{tpu_custom_call.1} parent=35 // pred_region
          %261 = dma.done %s254, 256
        $region44: #{tpu_custom_call.1} parent=35 // pred_fallthru
          _
        %p262 = pneg %p40
        %p263 = pneg %p37
        %s264 = smul.u32 2, %s24
        %s265 = ssub.s32 3, %s264
        %p266 = scmp.lt.s32.totalorder %s265, 2
        %s267 = scalar_select %p266, %s265, 2
        %s268 = smul.u32 128, %s267
        %p269 = scmp.lt.s32.totalorder %s264, 2
        %s270 = scalar_select %p269, %s264, 2
        %s271 = smul.addr %s270, 8
        %s272 = scalar_lea.vmem %s1, %s271
        %p273 = pneg %p66
        %p274 = pneg %p63
        %s275 = sand.u32 %s79, 1
        %s276 = scalar_lea.sflag [#allocation3], %s275
        %s277 = sand.u32 %s79, 1
        %s278 = smul.addr %s277, 16
        %s279 = scalar_lea.vmem [#allocation2], %s278
        %p280 = pneg %p92
        %p281 = pneg %p89
        %s282 = sand.u32 %s105, 1
        %s283 = scalar_lea.sflag [#allocation6], %s282
        %s284 = sand.u32 %s105, 1
        %s285 = smul.addr %s284, 16
        %s286 = scalar_lea.vmem [#allocation5], %s285
        %p287 = pneg %p118
        %p288 = pneg %p115
        %p289 = pneg %p144
        %p290 = pneg %p141
        %s291 = sand.u32 %s131, 1
        %s292 = scalar_lea.sflag [#allocation4], %s291
        %s293 = sand.u32 %s131, 1
        %s294 = smul.addr %s293, 8
        %s295 = scalar_lea.vmem [#allocation7], %s294
        %s296 = smul.u32 2, %s24
        %s297 = ssub.s32 3, %s296
        %p298 = scmp.lt.s32.totalorder %s297, 2
        %s299 = scalar_select %p298, %s297, 2
        %s300 = smul.u32 128, %s299
        %p301 = scmp.lt.s32.totalorder %s296, 2
        %s302 = scalar_select %p301, %s296, 2
        %s303 = smul.addr %s302, 8
        %s304 = scalar_lea.vmem %s1, %s303
        %s305 = smul.u32 2, %s24
        %s306 = ssub.s32 3, %s305
        %p307 = scmp.lt.s32.totalorder %s306, 2
        %s308 = scalar_select %p307, %s306, 2
        %s309 = smul.u32 128, %s308
        %s310 = smul.u32 2, %s24
        %s311 = ssub.s32 3, %s310
        %p312 = scmp.lt.s32.totalorder %s311, 2
        %s313 = scalar_select %p312, %s311, 2
        %s314 = smul.u32 128, %s313
        %s315 = smul.u32 2, %s24
        %s316 = ssub.s32 3, %s315
        %p317 = scmp.lt.s32.totalorder %s316, 2
        %s318 = scalar_select %p317, %s316, 2
        %s319 = smul.u32 128, %s318
        %s320 = smul.u32 %s24, 16
        %s321 = scalar_lea.vmem %s0, %s320
        %v322 = vld [vmem:[%s321] sm:$0xff]
        %v323 = vld [vmem:[%s321 + $0x8] sm:$0xff]
        %v324 = vlaneseq
        %v325 = vand.u32 %v324, 127
        %326 = vset.pattern.permute.xlu0 0
        %327 = vperm.xlu0 %326, %v322
        %v328 = vpop.permute.xlu0 %327
        %329 = vset.pattern.permute.xlu0 0
        %330 = vperm.xlu0 %329, %v323
        %v331 = vpop.permute.xlu0 %330
        %vm332 = vcmp.eq.s32.totalorder %v325, %v328
        %vm333 = vcmp.eq.s32.totalorder %v325, %v331
        %p334 = scmp.ne.s32.totalorder %s24, 1
        // Predicated region
        $region45: #{tpu_custom_call.1} parent=35 // pred_check
          %p335 = pneg %p334
        $region46: #{tpu_custom_call.1} parent=35 // pred_check_branch
          %337 = sbr.rel (%p335) target = $region48
        $region47: #{tpu_custom_call.1} parent=35 // pred_region
          %v338 = vld [vmem:[%s304] sm:$0xff]
          %v339 = vld [vmem:[%s304 + $0x8] sm:$0xff]
          %v340 = vsel %vm332, %v338, 0.0
          %v341 = vsel %vm333, %v339, 0.0
          %342 = vadd.xlane.f32.xlu0 %v340
          %v343 = vpop.xlane.xlu0 %342
          %344 = vadd.xlane.f32.xlu0 %v341
          %v345 = vpop.xlane.xlu0 %344
          %v346 = vsub.f32 1.0, %v343
          %v347 = vsub.f32 1.0, %v345
          %v348 = vld [vmem:[%s248] sm:$0xff]
          %v349 = vld [vmem:[%s248 + $0x8] sm:$0xff]
          %350 = vmax.xlane.f32.xlu0 %v348
          %v351 = vpop.xlane.xlu0 %350
          %352 = vmax.xlane.f32.xlu0 %v349
          %v353 = vpop.xlane.xlu0 %352
          %v354 = vsub.f32 %v348, %v351
          %v355 = vsub.f32 %v349, %v353
          %v356 = vmul.f32 %v354, 1.442695
          %v357 = vpow.pop %v356
          %v358 = vmul.f32 %v355, 1.442695
          %v359 = vpow.pop %v358
          %360 = vadd.xlane.f32.xlu0 %v357
          %v361 = vpop.xlane.xlu0 %360
          %362 = vadd.xlane.f32.xlu0 %v359
          %v363 = vpop.xlane.xlu0 %362
          %v364 = vlog2.pop %v361
          %v365 = vmul.f32 %v364, 0.6931472
          %v366 = vlog2.pop %v363
          %v367 = vmul.f32 %v366, 0.6931472
          %v368 = vadd.f32 %v365, %v351
          %v369 = vadd.f32 %v367, %v353
          %v370 = vsel %vm332, %v348, 0.0
          %v371 = vsel %vm333, %v349, 0.0
          %372 = vadd.xlane.f32.xlu0 %v370
          %v373 = vpop.xlane.xlu0 %372
          %374 = vadd.xlane.f32.xlu0 %v371
          %v375 = vpop.xlane.xlu0 %374
          %v376 = vsub.f32 %v368, %v373
          %v377 = vsub.f32 %v369, %v375
          %v378 = vld [vmem:[%s257] sm:$0xff]
          %v379 = vld [vmem:[%s257 + $0x8] sm:$0xff]
          %380 = vmax.xlane.f32.xlu0 %v378
          %v381 = vpop.xlane.xlu0 %380
          %382 = vmax.xlane.f32.xlu0 %v379
          %v383 = vpop.xlane.xlu0 %382
          %v384 = vsub.f32 %v378, %v381
          %v385 = vsub.f32 %v379, %v383
          %v386 = vmul.f32 %v384, 1.442695
          %v387 = vpow.pop %v386
          %v388 = vmul.f32 %v385, 1.442695
          %v389 = vpow.pop %v388
          %390 = vadd.xlane.f32.xlu0 %v387
          %v391 = vpop.xlane.xlu0 %390
          %392 = vadd.xlane.f32.xlu0 %v389
          %v393 = vpop.xlane.xlu0 %392
          %v394 = vlog2.pop %v391
          %v395 = vmul.f32 %v394, 0.6931472
          %v396 = vlog2.pop %v393
          %v397 = vmul.f32 %v396, 0.6931472
          %v398 = vadd.f32 %v395, %v381
          %v399 = vadd.f32 %v397, %v383
          %v400 = vsel %vm332, %v378, 0.0
          %v401 = vsel %vm333, %v379, 0.0
          %402 = vadd.xlane.f32.xlu0 %v400
          %v403 = vpop.xlane.xlu0 %402
          %404 = vadd.xlane.f32.xlu0 %v401
          %v405 = vpop.xlane.xlu0 %404
          %v406 = vsub.f32 %v398, %v403
          %v407 = vsub.f32 %v399, %v405
          %vm408 = vcmask 7168
          %v409 = vsel %vm408, %v346, 0.0
          %v410 = vsel %vm408, %v347, 0.0
          %v411 = vadd.f32 %v409, %v410
          %412 = vadd.xlane.f32.xlu0 %v411
          %v413 = vpop.xlane.xlu0 %412
          %v414 = vrot.slane %v413, 4
          %v415 = vadd.f32 %v413, %v414
          %v416 = vrot.slane %v415, 2
          %v417 = vadd.f32 %v415, %v416
          %v418 = vrot.slane %v417, 1
          %v419 = vadd.f32 %v417, %v418
          %s420 = vtos %v419
          %v421 = vsel %vm408, %v376, 0.0
          %v422 = vsel %vm408, %v377, 0.0
          %v423 = vadd.f32 %v421, %v422
          %424 = vadd.xlane.f32.xlu0 %v423
          %v425 = vpop.xlane.xlu0 %424
          %v426 = vrot.slane %v425, 4
          %v427 = vadd.f32 %v425, %v426
          %v428 = vrot.slane %v427, 2
          %v429 = vadd.f32 %v427, %v428
          %v430 = vrot.slane %v429, 1
          %v431 = vadd.f32 %v429, %v430
          %s432 = vtos %v431
          %v433 = vsel %vm408, %v406, 0.0
          %v434 = vsel %vm408, %v407, 0.0
          %v435 = vadd.f32 %v433, %v434
          %436 = vadd.xlane.f32.xlu0 %v435
          %v437 = vpop.xlane.xlu0 %436
          %v438 = vrot.slane %v437, 4
          %v439 = vadd.f32 %v437, %v438
          %v440 = vrot.slane %v439, 2
          %v441 = vadd.f32 %v439, %v440
          %v442 = vrot.slane %v441, 1
          %v443 = vadd.f32 %v441, %v442
          %s444 = vtos %v443
          %v445 = vlaneseq
          %v446 = vshrl.u32 %v445, 7
          %vm447 = vcmp.eq.s32.totalorder %v446, 0
          %v448 = vstv %s420
          %v449 = vsel %vm447, %v448, 0.0
          %vm450 = vcmp.eq.s32.totalorder %v446, 1
          %v451 = vstv %s432
          %v452 = vsel %vm450, %v451, 0.0
          %v453 = vadd.f32 %v449, %v452
          %vm454 = vcmp.eq.s32.totalorder %v446, 2
          %v455 = vstv %s444
          %v456 = vsel %vm454, %v455, 0.0
          %v457 = vadd.f32 %v453, %v456
          %458 = vst [vmem:[%s295] sm:$0xff] %v457
        $region48: #{tpu_custom_call.1} parent=35 // pred_fallthru
          _
        %p459 = scmp.eq.s32.totalorder %s24, 1
        // Predicated region
        $region49: #{tpu_custom_call.1} parent=35 // pred_check
          %p460 = pneg %p459
        $region50: #{tpu_custom_call.1} parent=35 // pred_check_branch
          %462 = sbr.rel (%p460) target = $region52
        $region51: #{tpu_custom_call.1} parent=35 // pred_region
          %v463 = vld [vmem:[%s304] sm:$0xff]
          %v464 = vld [vmem:[%s304 + $0x8] sm:$0xff]
          %v465 = vsel %vm332, %v463, 0.0
          %v466 = vsel %vm333, %v464, 0.0
          %467 = vadd.xlane.f32.xlu0 %v465
          %v468 = vpop.xlane.xlu0 %467
          %469 = vadd.xlane.f32.xlu0 %v466
          %v470 = vpop.xlane.xlu0 %469
          %v471 = vsub.f32 1.0, %v468
          %v472 = vsub.f32 1.0, %v470
          %v473 = vld [vmem:[%s248] sm:$0xff]
          %v474 = vld [vmem:[%s248 + $0x8] sm:$0xff]
          %475 = vmax.xlane.f32.xlu0 %v473
          %v476 = vpop.xlane.xlu0 %475
          %477 = vmax.xlane.f32.xlu0 %v474
          %v478 = vpop.xlane.xlu0 %477
          %v479 = vsub.f32 %v473, %v476
          %v480 = vsub.f32 %v474, %v478
          %v481 = vmul.f32 %v479, 1.442695
          %v482 = vpow.pop %v481
          %v483 = vmul.f32 %v480, 1.442695
          %v484 = vpow.pop %v483
          %485 = vadd.xlane.f32.xlu0 %v482
          %v486 = vpop.xlane.xlu0 %485
          %487 = vadd.xlane.f32.xlu0 %v484
          %v488 = vpop.xlane.xlu0 %487
          %v489 = vlog2.pop %v486
          %v490 = vmul.f32 %v489, 0.6931472
          %v491 = vlog2.pop %v488
          %v492 = vmul.f32 %v491, 0.6931472
          %v493 = vadd.f32 %v490, %v476
          %v494 = vadd.f32 %v492, %v478
          %v495 = vsel %vm332, %v473, 0.0
          %v496 = vsel %vm333, %v474, 0.0
          %497 = vadd.xlane.f32.xlu0 %v495
          %v498 = vpop.xlane.xlu0 %497
          %499 = vadd.xlane.f32.xlu0 %v496
          %v500 = vpop.xlane.xlu0 %499
          %v501 = vsub.f32 %v493, %v498
          %v502 = vsub.f32 %v494, %v500
          %v503 = vld [vmem:[%s257] sm:$0xff]
          %v504 = vld [vmem:[%s257 + $0x8] sm:$0xff]
          %505 = vmax.xlane.f32.xlu0 %v503
          %v506 = vpop.xlane.xlu0 %505
          %507 = vmax.xlane.f32.xlu0 %v504
          %v508 = vpop.xlane.xlu0 %507
          %v509 = vsub.f32 %v503, %v506
          %v510 = vsub.f32 %v504, %v508
          %v511 = vmul.f32 %v509, 1.442695
          %v512 = vpow.pop %v511
          %v513 = vmul.f32 %v510, 1.442695
          %v514 = vpow.pop %v513
          %515 = vadd.xlane.f32.xlu0 %v512
          %v516 = vpop.xlane.xlu0 %515
          %517 = vadd.xlane.f32.xlu0 %v514
          %v518 = vpop.xlane.xlu0 %517
          %v519 = vlog2.pop %v516
          %v520 = vmul.f32 %v519, 0.6931472
          %v521 = vlog2.pop %v518
          %v522 = vmul.f32 %v521, 0.6931472
          %v523 = vadd.f32 %v520, %v506
          %v524 = vadd.f32 %v522, %v508
          %v525 = vsel %vm332, %v503, 0.0
          %v526 = vsel %vm333, %v504, 0.0
          %527 = vadd.xlane.f32.xlu0 %v525
          %v528 = vpop.xlane.xlu0 %527
          %529 = vadd.xlane.f32.xlu0 %v526
          %v530 = vpop.xlane.xlu0 %529
          %v531 = vsub.f32 %v523, %v528
          %v532 = vsub.f32 %v524, %v530
          %v533 = vlaneseq
          %v534 = vshrl.u32 %v533, 7
          %v535 = vadd.s32 %v534, 8
          %v536 = vstv %s320
          %v537 = vadd.s32 %v536, %v534
          %v538 = vadd.s32 %v536, %v535
          %vm539 = vcmp.lt.s32.totalorder %v537, 20
          %vm540 = vcmp.lt.s32.totalorder %v538, 20
          %v541 = vsel %vm539, %v471, 0.0
          %v542 = vsel %vm540, %v472, 0.0
          %v543 = vsel %vm539, %v501, 0.0
          %v544 = vsel %vm540, %v502, 0.0
          %v545 = vsel %vm539, %v531, 0.0
          %v546 = vsel %vm540, %v532, 0.0
          %vm547 = vcmask 7168
          %v548 = vsel %vm547, %v541, 0.0
          %v549 = vsel %vm547, %v542, 0.0
          %v550 = vadd.f32 %v548, %v549
          %551 = vadd.xlane.f32.xlu0 %v550
          %v552 = vpop.xlane.xlu0 %551
          %v553 = vrot.slane %v552, 4
          %v554 = vadd.f32 %v552, %v553
          %v555 = vrot.slane %v554, 2
          %v556 = vadd.f32 %v554, %v555
          %v557 = vrot.slane %v556, 1
          %v558 = vadd.f32 %v556, %v557
          %s559 = vtos %v558
          %v560 = vsel %vm547, %v543, 0.0
          %v561 = vsel %vm547, %v544, 0.0
          %v562 = vadd.f32 %v560, %v561
          %563 = vadd.xlane.f32.xlu0 %v562
          %v564 = vpop.xlane.xlu0 %563
          %v565 = vrot.slane %v564, 4
          %v566 = vadd.f32 %v564, %v565
          %v567 = vrot.slane %v566, 2
          %v568 = vadd.f32 %v566, %v567
          %v569 = vrot.slane %v568, 1
          %v570 = vadd.f32 %v568, %v569
          %s571 = vtos %v570
          %v572 = vsel %vm547, %v545, 0.0
          %v573 = vsel %vm547, %v546, 0.0
          %v574 = vadd.f32 %v572, %v573
          %575 = vadd.xlane.f32.xlu0 %v574
          %v576 = vpop.xlane.xlu0 %575
          %v577 = vrot.slane %v576, 4
          %v578 = vadd.f32 %v576, %v577
          %v579 = vrot.slane %v578, 2
          %v580 = vadd.f32 %v578, %v579
          %v581 = vrot.slane %v580, 1
          %v582 = vadd.f32 %v580, %v581
          %s583 = vtos %v582
          %vm584 = vcmp.eq.s32.totalorder %v534, 0
          %v585 = vstv %s559
          %v586 = vsel %vm584, %v585, 0.0
          %vm587 = vcmp.eq.s32.totalorder %v534, 1
          %v588 = vstv %s571
          %v589 = vsel %vm587, %v588, 0.0
          %v590 = vadd.f32 %v586, %v589
          %vm591 = vcmp.eq.s32.totalorder %v534, 2
          %v592 = vstv %s583
          %v593 = vsel %vm591, %v592, 0.0
          %v594 = vadd.f32 %v590, %v593
          %595 = vst [vmem:[%s295] sm:$0xff] %v594
        $region52: #{tpu_custom_call.1} parent=35 // pred_fallthru
          _
        %s596 = sand.u32 %s131, 1
        %s597 = scalar_lea.sflag [#allocation4], %s596
        %s598 = sand.u32 %s131, 1
        %s599 = smul.addr %s598, 8
        %s600 = scalar_lea.vmem [#allocation7], %s599
        // Predicated region
        $region53: #{tpu_custom_call.1} parent=35 // pred_check
          %p601 = pneg %p141
        $region54: #{tpu_custom_call.1} parent=35 // pred_check_branch
          %603 = sbr.rel (%p601) target = $region56
        $region55: #{tpu_custom_call.1} parent=35 // pred_region
          %s605 = ssub.s32 128, 128
          %606 = vsyncadd %s597, %s605
          %s607 = smul.addr %s24, 128
          %s608 = scalar_lea.hbm %s4, %s607
          %s610 = sshll.u32 %s600, 4
          %s611 = int_to_ptr.vmem [resolvable:$true] %s610
          %613 = dma.vmem_to_hbm [thread:$0]  %s611, 128, %s608, %s597
        $region56: #{tpu_custom_call.1} parent=35 // pred_fallthru
          _
      $region36: #{tpu_custom_call.1} parent=5 // pred_fallthru
        _
      %p614 = scmp.le.s32.totalorder 2, %s19
      // Predicated region
      $region57: #{tpu_custom_call.1} parent=5 // pred_check
        %p615 = pneg %p614
      $region58: #{tpu_custom_call.1} parent=5 // pred_check_branch
        %617 = sbr.rel (%p615) target = $region60
      $region59: #{tpu_custom_call.1} parent=5 // pred_region
        %s618 = ssub.s32 %s19, 2
        // Predicated region
        $region61: #{tpu_custom_call.1} parent=59 // pred_check
          %p619 = pneg %p147
        $region62: #{tpu_custom_call.1} parent=59 // pred_check_branch
          %621 = sbr.rel (%p619) target = $region64
        $region63: #{tpu_custom_call.1} parent=59 // pred_region
          %s622 = sand.u32 %s132, 1
          %s623 = scalar_lea.sflag [#allocation4], %s622
          %s624 = sand.u32 %s132, 1
          %s625 = smul.addr %s624, 8
          %s626 = scalar_lea.vmem [#allocation7], %s625
          %627 = dma.done %s623, 128
        $region64: #{tpu_custom_call.1} parent=59 // pred_fallthru
          _
      $region60: #{tpu_custom_call.1} parent=5 // pred_fallthru
        _
    $region6: #{tpu_custom_call.1} parent=1 // loop_footer
      %s23 = sadd.s32 1, %s19
    $region7: #{tpu_custom_call.1} parent=1 // loop_footer_branch
      %18 = sbr.rel target = $region3
    $region8: #{tpu_custom_call.1} parent=1 // loop_exit
      _
    %628 = vsyncpa [#allocation3], 1
    %s629 = scalar_lea.sflag [#allocation3], 1
    %630 = vsyncpa %s629, 1
    %631 = vsyncpa [#allocation6], 1
    %s632 = scalar_lea.sflag [#allocation6], 1
    %633 = vsyncpa %s632, 1
    %634 = vsyncpa [#allocation4], 1
    %s635 = scalar_lea.sflag [#allocation4], 1
    %636 = vsyncpa %s635, 1

</llo_original>
